<compile_context>
chip_gen: v5e
topology: v5e:2x2
jax: 0.10.0
libtpu: 0.0.40
codegen_flags: <defaults>
</compile_context>

<pallas_src>
import functools

import jax
import jax.numpy as jnp
from jax.experimental import pallas as pl
from jax.experimental.pallas import tpu as pltpu

# ---- "Group" config: SO(3)-like (matrix_dim=3, algebra dim=3) ----
MATRIX_DIM = 3
GROUP_DIM = 3
H = 32          # network width (small for the example; module default is 64)
L = 2           # number of hidden Linear+SiLU blocks beyond the first
SIGMA = 0.1     # unused in forward(); kept for fidelity with the module signature


def _round_up(x, m):
    return ((x + m - 1) // m) * m


def _mlp_kernel(n_hidden, g_ref, t_ref, w0g_ref, w0t_ref, b0_ref, *refs):
    """Batch-on-lane MLP over one batch tile.

    Activations are (features, TB): batch tile on the lane axis.
    refs = (w1, b1, ..., w_{n_hidden}, b_{n_hidden}, w_out, b_out, out_ref).
    Weights are (out_features, in_features); biases are (out_features, 1).
    Layer 0's concat([g, t]) is fused: h0 = W0_g @ g + W0_t * t + b0.
    """
    out_ref = refs[-1]
    wb = refs[:-1]

    g = g_ref[...].astype(jnp.float32)          # (in_feat, TB)
    t = t_ref[...].astype(jnp.float32)          # (1, TB)

    w0g = w0g_ref[...].astype(jnp.float32)      # (H, in_feat)
    w0t = w0t_ref[...].astype(jnp.float32)      # (H, 1)
    b0 = b0_ref[...].astype(jnp.float32)        # (H, 1)

    h = jnp.dot(w0g, g, preferred_element_type=jnp.float32) + w0t * t + b0
    h = h * jax.nn.sigmoid(h)                   # SiLU; sigmoid/exp go to the EUP

    for i in range(n_hidden):
        w = wb[2 * i][...].astype(jnp.float32)          # (H, H)
        b = wb[2 * i + 1][...].astype(jnp.float32)      # (H, 1)
        h = jnp.dot(w, h, preferred_element_type=jnp.float32) + b
        h = h * jax.nn.sigmoid(h)

    w_out = wb[-2][...].astype(jnp.float32)     # (out_dim, H)
    b_out = wb[-1][...].astype(jnp.float32)     # (out_dim, 1)
    out = jnp.dot(w_out, h, preferred_element_type=jnp.float32) + b_out
    out_ref[...] = out.astype(out_ref.dtype)    # (out_dim, TB): lane-dense store


def init_params(key, input_dim, hidden, depth, output_dim, dtype=jnp.float32):
    """nn.Linear-style init U(-1/sqrt(fan_in), 1/sqrt(fan_in)); weights are (out, in)."""
    dims = [input_dim] + [hidden] * (depth + 1) + [output_dim]
    params = []
    for i in range(len(dims) - 1):
        fan_in, fan_out = dims[i], dims[i + 1]
        key, kw, kb = jax.random.split(key, 3)
        bound = 1.0 / float(fan_in) ** 0.5
        W = jax.random.uniform(kw, (fan_out, fan_in), jnp.float32, -bound, bound)
        b = jax.random.uniform(kb, (fan_out,), jnp.float32, -bound, bound)
        params.append((W.astype(dtype), b.astype(dtype)))
    return params


def _flatten_inputs(g, t):
    """Replicates the module's input massaging (plain-JAX glue, fused under jit)."""
    batch = g.shape[0]
    if g.ndim == 3 and g.shape[1] == g.shape[2] == MATRIX_DIM:
        g_flat = g.reshape(batch, -1)
    else:
        g_flat = g
    if t.ndim == 1:
        t = t[:, None]
    return g_flat, t.astype(g_flat.dtype)


@functools.partial(jax.jit, static_argnames=("block_b",))
def sb_lie_flow_forward(params, g, t, *, block_b=512):
    """Pallas-backed forward pass: predicted vector field in the Lie algebra, (B, G.dim)."""
    g_flat, t2 = _flatten_inputs(g, t)
    batch, in_feat = g_flat.shape
    hidden = params[0][0].shape[0]
    out_dim = params[-1][0].shape[0]
    n_hidden = len(params) - 2

    # Batch-on-lane layout: (features, batch) so every elementwise op, the MXU N-dim,
    # and the output store are lane-dense over the batch tile.
    g_T = g_flat.T                     # (in_feat, B)
    t_T = t2.T                         # (1, B)

    tb = min(block_b, _round_up(batch, 128))     # batch tile, multiple of 128
    b_pad = _round_up(batch, tb)
    if b_pad != batch:
        # Padded tail columns compute finite garbage and are sliced off below.
        g_T = jnp.pad(g_T, ((0, 0), (0, b_pad - batch)))
        t_T = jnp.pad(t_T, ((0, 0), (0, b_pad - batch)))

    # Split layer-0 weights so the concat([g_flat, t]) is fused inside the kernel.
    W0, b0 = params[0]
    w0_g = W0[:, :in_feat]             # (H, in_feat)
    w0_t = W0[:, in_feat:in_feat + 1]  # (H, 1)

    flat_args = [g_T, t_T, w0_g, w0_t, b0.reshape(-1, 1)]
    for W, b in params[1:]:
        flat_args.append(W)
        flat_args.append(b.reshape(-1, 1))

    grid = (b_pad // tb,)

    def batch_block(arr):
        return pl.BlockSpec((arr.shape[0], tb), lambda i: (0, i))

    def resident(arr):
        # Full-array block + constant index_map: DMA'd once, stays VMEM-resident.
        return pl.BlockSpec(arr.shape, lambda i: (0, 0))

    in_specs = [batch_block(g_T), batch_block(t_T)]
    in_specs += [resident(a) for a in flat_args[2:]]
    out_specs = pl.BlockSpec((out_dim, tb), lambda i: (0, i))

    param_elems = int(sum(w.size + b.size for w, b in params))
    cost = pl.CostEstimate(
        flops=int(2 * b_pad * sum(w.size for w, _ in params)),
        transcendentals=int(b_pad * hidden * (n_hidden + 1)),
        bytes_accessed=int(4 * (b_pad * (in_feat + 1 + out_dim) + param_elems)),
    )

    out_t = pl.pallas_call(
        functools.partial(_mlp_kernel, n_hidden),
        grid=grid,
        in_specs=in_specs,
        out_specs=out_specs,
        out_shape=jax.ShapeDtypeStruct((out_dim, b_pad), g_flat.dtype),
        compiler_params=pltpu.CompilerParams(
            dimension_semantics=("parallel",),          # megacore: split batch tiles
            vmem_limit_bytes=32 * 1024 * 1024,          # explicit, fits v5e/v6e/v7x
        ),
        cost_estimate=cost,
    )(*flat_args)

    return out_t.T[:batch]


def sb_lie_flow_forward_ref(params, g, t):
    """Pure-JAX reference (mirrors the nn.Sequential exactly)."""
    g_flat, t2 = _flatten_inputs(g, t)
    h = jnp.concatenate([g_flat, t2], axis=1)
    n = len(params)
    for i, (W, b) in enumerate(params):
        h = h @ W.T + b
        if i < n - 1:
            h = h * jax.nn.sigmoid(h)
    return h


if __name__ == "__main__":
    key = jax.random.PRNGKey(0)
    k_params, k_g, k_t, k_g2, k_t2 = jax.random.split(key, 5)

    input_dim = MATRIX_DIM ** 2 + 1   # 10
    output_dim = GROUP_DIM            # 3
    params = init_params(k_params, input_dim, H, L, output_dim)

    # Small example batch: 8 "group elements" as 3x3 matrices + times in [0, 1].
    batch = 8
    g = jax.random.normal(k_g, (batch, MATRIX_DIM, MATRIX_DIM), jnp.float32)
    t = jax.random.uniform(k_t, (batch,), jnp.float32)

    out = sb_lie_flow_forward(params, g, t)
    out = jax.block_until_ready(out)
    ref = sb_lie_flow_forward_ref(params, g, t)
    assert out.shape == (batch, output_dim), out.shape
    assert jnp.allclose(out, ref, atol=1e-5, rtol=1e-5), "mismatch vs pure-JAX reference"

    # Second check exercising a multi-step batch grid with a ragged (padded) tail.
    batch2 = 300
    g2 = jax.random.normal(k_g2, (batch2, MATRIX_DIM, MATRIX_DIM), jnp.float32)
    t2 = jax.random.uniform(k_t2, (batch2,), jnp.float32)
    out2 = jax.block_until_ready(sb_lie_flow_forward(params, g2, t2, block_b=128))
    ref2 = sb_lie_flow_forward_ref(params, g2, t2)
    assert out2.shape == (batch2, output_dim), out2.shape
    assert jnp.allclose(out2, ref2, atol=1e-5, rtol=1e-5), "grid path mismatch vs reference"

    print("KERNEL_OK")
</pallas_src>

<mosaic_0001>
module attributes {stable_mosaic.version = 11 : i64} {
  func.func @_mlp_kernel(%arg0: i32, %arg1: memref<9x128xf32, #tpu.memory_space<vmem>>, %arg2: memref<1x128xf32, #tpu.memory_space<vmem>>, %arg3: memref<32x9xf32, #tpu.memory_space<vmem>>, %arg4: memref<32x1xf32, #tpu.memory_space<vmem>>, %arg5: memref<32x1xf32, #tpu.memory_space<vmem>>, %arg6: memref<32x32xf32, #tpu.memory_space<vmem>>, %arg7: memref<32x1xf32, #tpu.memory_space<vmem>>, %arg8: memref<32x32xf32, #tpu.memory_space<vmem>>, %arg9: memref<32x1xf32, #tpu.memory_space<vmem>>, %arg10: memref<3x32xf32, #tpu.memory_space<vmem>>, %arg11: memref<3x1xf32, #tpu.memory_space<vmem>>, %arg12: memref<3x128xf32, #tpu.memory_space<vmem>>) attributes {dimension_semantics = [#tpu.dimension_semantics<parallel>], iteration_bounds = array<i64: 1>, scalar_prefetch = 0 : i64, scratch_operands = 0 : i64, tpu.core_type = #tpu.core_type<tc>, window_params = [{transform_indices = @transform_0, window_bounds = array<i64: 9, 128>}, {transform_indices = @transform_1, window_bounds = array<i64: 1, 128>}, {pipeline_mode = #tpu.pipeline_mode<synchronous>, transform_indices = @transform_2, window_bounds = array<i64: 32, 9>}, {pipeline_mode = #tpu.pipeline_mode<synchronous>, transform_indices = @transform_3, window_bounds = array<i64: 32, 1>}, {pipeline_mode = #tpu.pipeline_mode<synchronous>, transform_indices = @transform_4, window_bounds = array<i64: 32, 1>}, {pipeline_mode = #tpu.pipeline_mode<synchronous>, transform_indices = @transform_5, window_bounds = array<i64: 32, 32>}, {pipeline_mode = #tpu.pipeline_mode<synchronous>, transform_indices = @transform_6, window_bounds = array<i64: 32, 1>}, {pipeline_mode = #tpu.pipeline_mode<synchronous>, transform_indices = @transform_7, window_bounds = array<i64: 32, 32>}, {pipeline_mode = #tpu.pipeline_mode<synchronous>, transform_indices = @transform_8, window_bounds = array<i64: 32, 1>}, {pipeline_mode = #tpu.pipeline_mode<synchronous>, transform_indices = @transform_9, window_bounds = array<i64: 3, 32>}, {pipeline_mode = #tpu.pipeline_mode<synchronous>, transform_indices = @transform_10, window_bounds = array<i64: 3, 1>}, {transform_indices = @transform_11, window_bounds = array<i64: 3, 128>}]} {
    %c0 = arith.constant 0 : index
    %c0_0 = arith.constant 0 : index
    %0 = vector.load %arg1[%c0, %c0_0] : memref<9x128xf32, #tpu.memory_space<vmem>>, vector<9x128xf32>
    %c0_1 = arith.constant 0 : index
    %c0_2 = arith.constant 0 : index
    %1 = vector.load %arg2[%c0_1, %c0_2] : memref<1x128xf32, #tpu.memory_space<vmem>>, vector<1x128xf32>
    %c0_3 = arith.constant 0 : index
    %c0_4 = arith.constant 0 : index
    %2 = vector.load %arg3[%c0_3, %c0_4] : memref<32x9xf32, #tpu.memory_space<vmem>>, vector<32x9xf32>
    %c0_5 = arith.constant 0 : index
    %c0_6 = arith.constant 0 : index
    %3 = vector.load %arg4[%c0_5, %c0_6] : memref<32x1xf32, #tpu.memory_space<vmem>>, vector<32x1xf32>
    %c0_7 = arith.constant 0 : index
    %c0_8 = arith.constant 0 : index
    %4 = vector.load %arg5[%c0_7, %c0_8] : memref<32x1xf32, #tpu.memory_space<vmem>>, vector<32x1xf32>
    %cst = arith.constant dense<0.000000e+00> : vector<32x128xf32>
    %5 = tpu.matmul %2, %0, %cst {dimension_numbers = #tpu.dot_dimension_numbers<[1], [0], [0], [1], [0, 0, 1, 1], [], []>} : vector<32x9xf32>, vector<9x128xf32>, vector<32x128xf32> -> vector<32x128xf32>
    %6 = vector.broadcast %3 : vector<32x1xf32> to vector<32x128xf32>
    %7 = vector.broadcast %1 : vector<1x128xf32> to vector<32x128xf32>
    %8 = arith.mulf %6, %7 : vector<32x128xf32>
    %9 = arith.addf %5, %8 : vector<32x128xf32>
    %10 = vector.broadcast %4 : vector<32x1xf32> to vector<32x128xf32>
    %11 = arith.addf %9, %10 : vector<32x128xf32>
    %12 = arith.negf %11 : vector<32x128xf32>
    %13 = math.exp %12 : vector<32x128xf32>
    %cst_9 = arith.constant 1.000000e+00 : f32
    %14 = vector.broadcast %cst_9 : f32 to vector<32x128xf32>
    %15 = arith.addf %14, %13 : vector<32x128xf32>
    %16 = arith.divf %14, %15 : vector<32x128xf32>
    %17 = arith.mulf %11, %16 : vector<32x128xf32>
    %c0_10 = arith.constant 0 : index
    %c0_11 = arith.constant 0 : index
    %18 = vector.load %arg6[%c0_10, %c0_11] : memref<32x32xf32, #tpu.memory_space<vmem>>, vector<32x32xf32>
    %c0_12 = arith.constant 0 : index
    %c0_13 = arith.constant 0 : index
    %19 = vector.load %arg7[%c0_12, %c0_13] : memref<32x1xf32, #tpu.memory_space<vmem>>, vector<32x1xf32>
    %cst_14 = arith.constant dense<0.000000e+00> : vector<32x128xf32>
    %20 = tpu.matmul %18, %17, %cst_14 {dimension_numbers = #tpu.dot_dimension_numbers<[1], [0], [0], [1], [0, 0, 1, 1], [], []>} : vector<32x32xf32>, vector<32x128xf32>, vector<32x128xf32> -> vector<32x128xf32>
    %21 = vector.broadcast %19 : vector<32x1xf32> to vector<32x128xf32>
    %22 = arith.addf %20, %21 : vector<32x128xf32>
    %23 = arith.negf %22 : vector<32x128xf32>
    %24 = math.exp %23 : vector<32x128xf32>
    %cst_15 = arith.constant 1.000000e+00 : f32
    %25 = vector.broadcast %cst_15 : f32 to vector<32x128xf32>
    %26 = arith.addf %25, %24 : vector<32x128xf32>
    %27 = arith.divf %25, %26 : vector<32x128xf32>
    %28 = arith.mulf %22, %27 : vector<32x128xf32>
    %c0_16 = arith.constant 0 : index
    %c0_17 = arith.constant 0 : index
    %29 = vector.load %arg8[%c0_16, %c0_17] : memref<32x32xf32, #tpu.memory_space<vmem>>, vector<32x32xf32>
    %c0_18 = arith.constant 0 : index
    %c0_19 = arith.constant 0 : index
    %30 = vector.load %arg9[%c0_18, %c0_19] : memref<32x1xf32, #tpu.memory_space<vmem>>, vector<32x1xf32>
    %cst_20 = arith.constant dense<0.000000e+00> : vector<32x128xf32>
    %31 = tpu.matmul %29, %28, %cst_20 {dimension_numbers = #tpu.dot_dimension_numbers<[1], [0], [0], [1], [0, 0, 1, 1], [], []>} : vector<32x32xf32>, vector<32x128xf32>, vector<32x128xf32> -> vector<32x128xf32>
    %32 = vector.broadcast %30 : vector<32x1xf32> to vector<32x128xf32>
    %33 = arith.addf %31, %32 : vector<32x128xf32>
    %34 = arith.negf %33 : vector<32x128xf32>
    %35 = math.exp %34 : vector<32x128xf32>
    %cst_21 = arith.constant 1.000000e+00 : f32
    %36 = vector.broadcast %cst_21 : f32 to vector<32x128xf32>
    %37 = arith.addf %36, %35 : vector<32x128xf32>
    %38 = arith.divf %36, %37 : vector<32x128xf32>
    %39 = arith.mulf %33, %38 : vector<32x128xf32>
    %c0_22 = arith.constant 0 : index
    %c0_23 = arith.constant 0 : index
    %40 = vector.load %arg10[%c0_22, %c0_23] : memref<3x32xf32, #tpu.memory_space<vmem>>, vector<3x32xf32>
    %c0_24 = arith.constant 0 : index
    %c0_25 = arith.constant 0 : index
    %41 = vector.load %arg11[%c0_24, %c0_25] : memref<3x1xf32, #tpu.memory_space<vmem>>, vector<3x1xf32>
    %cst_26 = arith.constant dense<0.000000e+00> : vector<3x128xf32>
    %42 = tpu.matmul %40, %39, %cst_26 {dimension_numbers = #tpu.dot_dimension_numbers<[1], [0], [0], [1], [0, 0, 1, 1], [], []>} : vector<3x32xf32>, vector<32x128xf32>, vector<3x128xf32> -> vector<3x128xf32>
    %43 = vector.broadcast %41 : vector<3x1xf32> to vector<3x128xf32>
    %44 = arith.addf %42, %43 : vector<3x128xf32>
    %c0_27 = arith.constant 0 : index
    %c0_28 = arith.constant 0 : index
    %45 = vector.load %arg12[%c0_27, %c0_28] : memref<3x128xf32, #tpu.memory_space<vmem>>, vector<3x128xf32>
    tpu.vector_store %arg12[%c0_27, %c0_28], %44 {strides = array<i32>} : memref<3x128xf32, #tpu.memory_space<vmem>>, vector<3x128xf32>,
    return
  }
  func.func @transform_0(%arg0: i32) -> (i32, i32) {
    %c0_i32 = arith.constant 0 : i32
    %c0_i32_0 = arith.constant 0 : i32
    return %c0_i32, %arg0 : i32, i32
  }
  func.func @transform_1(%arg0: i32) -> (i32, i32) {
    %c0_i32 = arith.constant 0 : i32
    %c0_i32_0 = arith.constant 0 : i32
    return %c0_i32, %arg0 : i32, i32
  }
  func.func @transform_2(%arg0: i32) -> (i32, i32) {
    %c0_i32 = arith.constant 0 : i32
    %c0_i32_0 = arith.constant 0 : i32
    %c0_i32_1 = arith.constant 0 : i32
    return %c0_i32, %c0_i32_0 : i32, i32
  }
  func.func @transform_3(%arg0: i32) -> (i32, i32) {
    %c0_i32 = arith.constant 0 : i32
    %c0_i32_0 = arith.constant 0 : i32
    %c0_i32_1 = arith.constant 0 : i32
    return %c0_i32, %c0_i32_0 : i32, i32
  }
  func.func @transform_4(%arg0: i32) -> (i32, i32) {
    %c0_i32 = arith.constant 0 : i32
    %c0_i32_0 = arith.constant 0 : i32
    %c0_i32_1 = arith.constant 0 : i32
    return %c0_i32, %c0_i32_0 : i32, i32
  }
  func.func @transform_5(%arg0: i32) -> (i32, i32) {
    %c0_i32 = arith.constant 0 : i32
    %c0_i32_0 = arith.constant 0 : i32
    %c0_i32_1 = arith.constant 0 : i32
    return %c0_i32, %c0_i32_0 : i32, i32
  }
  func.func @transform_6(%arg0: i32) -> (i32, i32) {
    %c0_i32 = arith.constant 0 : i32
    %c0_i32_0 = arith.constant 0 : i32
    %c0_i32_1 = arith.constant 0 : i32
    return %c0_i32, %c0_i32_0 : i32, i32
  }
  func.func @transform_7(%arg0: i32) -> (i32, i32) {
    %c0_i32 = arith.constant 0 : i32
    %c0_i32_0 = arith.constant 0 : i32
    %c0_i32_1 = arith.constant 0 : i32
    return %c0_i32, %c0_i32_0 : i32, i32
  }
  func.func @transform_8(%arg0: i32) -> (i32, i32) {
    %c0_i32 = arith.constant 0 : i32
    %c0_i32_0 = arith.constant 0 : i32
    %c0_i32_1 = arith.constant 0 : i32
    return %c0_i32, %c0_i32_0 : i32, i32
  }
  func.func @transform_9(%arg0: i32) -> (i32, i32) {
    %c0_i32 = arith.constant 0 : i32
    %c0_i32_0 = arith.constant 0 : i32
    %c0_i32_1 = arith.constant 0 : i32
    return %c0_i32, %c0_i32_0 : i32, i32
  }
  func.func @transform_10(%arg0: i32) -> (i32, i32) {
    %c0_i32 = arith.constant 0 : i32
    %c0_i32_0 = arith.constant 0 : i32
    %c0_i32_1 = arith.constant 0 : i32
    return %c0_i32, %c0_i32_0 : i32, i32
  }
  func.func @transform_11(%arg0: i32) -> (i32, i32) {
    %c0_i32 = arith.constant 0 : i32
    %c0_i32_0 = arith.constant 0 : i32
    return %c0_i32, %arg0 : i32, i32
  }
}

</mosaic_0001>

<llo_original>
// kernel: sb_lie_flow_forward.1
$region0: #{sb_lie_flow_forward.1}
  #allocation0 [shape = 'u32[]', space=smem, size = 0x4, offset = 0x4, fixed_abs, tag = 'smem constant byte address 0x4 - core index']
  #allocation1 [shape = 'u32[72,128]{1,0:T(1,128)}', space=vmem, size = 0x9000, scoped, tag = 'internal scratch']
  %s0 = inlined_call_operand.vmem [shape: f32[9,128], index: 0, kind: input, shape index: {}]
  %s1 = inlined_call_operand.vmem [shape: f32[1,128], index: 1, kind: input, shape index: {}]
  %s2 = inlined_call_operand.vmem [shape: f32[32,9], index: 2, kind: input, shape index: {}]
  %s3 = inlined_call_operand.vmem [shape: f32[32,1], index: 3, kind: input, shape index: {}]
  %s4 = inlined_call_operand.vmem [shape: f32[32,1], index: 4, kind: input, shape index: {}]
  %s5 = inlined_call_operand.vmem [shape: f32[32,32], index: 5, kind: input, shape index: {}]
  %s6 = inlined_call_operand.vmem [shape: f32[32,1], index: 6, kind: input, shape index: {}]
  %s7 = inlined_call_operand.vmem [shape: f32[32,32], index: 7, kind: input, shape index: {}]
  %s8 = inlined_call_operand.vmem [shape: f32[32,1], index: 8, kind: input, shape index: {}]
  %s9 = inlined_call_operand.vmem [shape: f32[3,32], index: 9, kind: input, shape index: {}]
  %s10 = inlined_call_operand.vmem [shape: f32[3,1], index: 10, kind: input, shape index: {}]
  %s11 = inlined_call_operand.hbm [shape: f32[3,128], index: 11, kind: output, shape index: {}]
  %s12 = sld [smem:[#allocation0]]
  $region54: #{sb_lie_flow_forward.1} parent=0
    _
  %s14 = ssub.s32 1, %s12
  %s15 = scalar_select 0, %s14, %s12
  $region1: #{sb_lie_flow_forward.1} parent=0
    #allocation2 [shape = 'u8[2048]{0}', space=vmem, size = 0x800, scoped, tag = 'output window, operand 0, single buffered']
    #allocation3 [shape = 's32[1]{0}', space=sflag, size = 0x4, scoped, tag = 'scoped memory for sb_lie_flow_forward.1']
    %16 = vsyncpa [#allocation3], 0
    // Predicated region
    $region2: #{sb_lie_flow_forward.1} parent=1 // pred_check
      _
    $region3: #{sb_lie_flow_forward.1} parent=1 // pred_check_branch
      %18 = sbr.rel (0) target = $region5
    $region4: #{sb_lie_flow_forward.1} parent=1 // pred_region
      _
    $region5: #{sb_lie_flow_forward.1} parent=1 // pred_fallthru
      _
    // Predicated region
    $region6: #{sb_lie_flow_forward.1} parent=1 // pred_check
      _
    $region7: #{sb_lie_flow_forward.1} parent=1 // pred_check_branch
      %20 = sbr.rel (0) target = $region9
    $region8: #{sb_lie_flow_forward.1} parent=1 // pred_region
      _
    $region9: #{sb_lie_flow_forward.1} parent=1 // pred_fallthru
      _
    // Predicated region
    $region10: #{sb_lie_flow_forward.1} parent=1 // pred_check
      _
    $region11: #{sb_lie_flow_forward.1} parent=1 // pred_check_branch
      %22 = sbr.rel (0) target = $region13
    $region12: #{sb_lie_flow_forward.1} parent=1 // pred_region
      _
    $region13: #{sb_lie_flow_forward.1} parent=1 // pred_fallthru
      _
    // Predicated region
    $region14: #{sb_lie_flow_forward.1} parent=1 // pred_check
      _
    $region15: #{sb_lie_flow_forward.1} parent=1 // pred_check_branch
      %24 = sbr.rel (0) target = $region17
    $region16: #{sb_lie_flow_forward.1} parent=1 // pred_region
      _
    $region17: #{sb_lie_flow_forward.1} parent=1 // pred_fallthru
      _
    // Predicated region
    $region18: #{sb_lie_flow_forward.1} parent=1 // pred_check
      _
    $region19: #{sb_lie_flow_forward.1} parent=1 // pred_check_branch
      %26 = sbr.rel (0) target = $region21
    $region20: #{sb_lie_flow_forward.1} parent=1 // pred_region
      _
    $region21: #{sb_lie_flow_forward.1} parent=1 // pred_fallthru
      _
    // Predicated region
    $region22: #{sb_lie_flow_forward.1} parent=1 // pred_check
      _
    $region23: #{sb_lie_flow_forward.1} parent=1 // pred_check_branch
      %28 = sbr.rel (0) target = $region25
    $region24: #{sb_lie_flow_forward.1} parent=1 // pred_region
      _
    $region25: #{sb_lie_flow_forward.1} parent=1 // pred_fallthru
      _
    // Predicated region
    $region26: #{sb_lie_flow_forward.1} parent=1 // pred_check
      _
    $region27: #{sb_lie_flow_forward.1} parent=1 // pred_check_branch
      %30 = sbr.rel (0) target = $region29
    $region28: #{sb_lie_flow_forward.1} parent=1 // pred_region
      _
    $region29: #{sb_lie_flow_forward.1} parent=1 // pred_fallthru
      _
    // Predicated region
    $region30: #{sb_lie_flow_forward.1} parent=1 // pred_check
      _
    $region31: #{sb_lie_flow_forward.1} parent=1 // pred_check_branch
      %32 = sbr.rel (0) target = $region33
    $region32: #{sb_lie_flow_forward.1} parent=1 // pred_region
      _
    $region33: #{sb_lie_flow_forward.1} parent=1 // pred_fallthru
      _
    // Predicated region
    $region34: #{sb_lie_flow_forward.1} parent=1 // pred_check
      _
    $region35: #{sb_lie_flow_forward.1} parent=1 // pred_check_branch
      %34 = sbr.rel (0) target = $region37
    $region36: #{sb_lie_flow_forward.1} parent=1 // pred_region
      _
    $region37: #{sb_lie_flow_forward.1} parent=1 // pred_fallthru
      _
    // Predicated region
    $region38: #{sb_lie_flow_forward.1} parent=1 // pred_check
      _
    $region39: #{sb_lie_flow_forward.1} parent=1 // pred_check_branch
      %36 = sbr.rel (0) target = $region41
    $region40: #{sb_lie_flow_forward.1} parent=1 // pred_region
      _
    $region41: #{sb_lie_flow_forward.1} parent=1 // pred_fallthru
      _
    // Predicated region
    $region42: #{sb_lie_flow_forward.1} parent=1 // pred_check
      _
    $region43: #{sb_lie_flow_forward.1} parent=1 // pred_check_branch
      %38 = sbr.rel (0) target = $region45
    $region44: #{sb_lie_flow_forward.1} parent=1 // pred_region
      _
    $region45: #{sb_lie_flow_forward.1} parent=1 // pred_fallthru
      _
    %v39 = vld [vmem:[%s0] sm:$0xff]
    %v40 = vld [vmem:[%s0 + $0x8] sm:$0x1]
    %v41 = vld [vmem:[%s1] sm:$0x1]
    %v42 = vld [vmem:[%s2] sm:$0xff]
    %v43 = vld [vmem:[%s2 + $0x8] sm:$0xff]
    %v44 = vld [vmem:[%s2 + $0x10] sm:$0xff]
    %v45 = vld [vmem:[%s2 + $0x18] sm:$0xff]
    %v46 = vld [vmem:[%s3] sm:$0xff]
    %v47 = vld [vmem:[%s3 + $0x8] sm:$0xff]
    %v48 = vld [vmem:[%s3 + $0x10] sm:$0xff]
    %v49 = vld [vmem:[%s3 + $0x18] sm:$0xff]
    %v50 = vld [vmem:[%s4] sm:$0xff]
    %v51 = vld [vmem:[%s4 + $0x8] sm:$0xff]
    %v52 = vld [vmem:[%s4 + $0x10] sm:$0xff]
    %v53 = vld [vmem:[%s4 + $0x18] sm:$0xff]
    %55 = vset.pattern.permute.xlu0 0
    %56 = vperm.xlu0 %55, %v46
    %v57 = vpop.permute.xlu0 %56
    %60 = vset.pattern.permute.xlu0 0
    %61 = vperm.xlu0 %60, %v47
    %v62 = vpop.permute.xlu0 %61
    %65 = vset.pattern.permute.xlu0 0
    %66 = vperm.xlu0 %65, %v48
    %v67 = vpop.permute.xlu0 %66
    %70 = vset.pattern.permute.xlu0 0
    %71 = vperm.xlu0 %70, %v49
    %v72 = vpop.permute.xlu0 %71
    %v75 = vperm.slane %v41, 0
    %v77 = vmul.f32 %v57, %v75
    %v78 = vmul.f32 %v62, %v75
    %v79 = vmul.f32 %v67, %v75
    %v80 = vmul.f32 %v72, %v75
    %vm81 = vcmask 72704
    %v83 = vsel %vm81, %v42, 0
    %v86 = vsel %vm81, %v43, 0
    %v89 = vsel %vm81, %v44, 0
    %v92 = vsel %vm81, %v45, 0
    %vm94 = vcmask 1040384
    %v96 = vsel %vm94, %v40, 0
    %98 = vmatpush.msra.mxu0 0.0
    %99 = vmatpush.msra.mxu0 0.0
    %100 = vmatpush.msra.mxu0 0.0
    %101 = vmatpush.msra.mxu0 0.0
    %102 = vmatpush.msra.mxu0 0.0
    %103 = vmatpush.msra.mxu0 0.0
    %104 = vmatpush.msra.mxu0 0.0
    %105 = vmatpush.msra.mxu0 0.0
    %106 = vmatpush.msra.mxu0 0.0
    %107 = vmatpush.msra.mxu0 0.0
    %108 = vmatpush.msra.mxu0 0.0
    %109 = vmatpush.msra.mxu0 0.0
    %110 = vmatpush.msra.mxu0 0.0
    %111 = vmatpush.msra.mxu0 0.0
    %112 = vmatpush.msra.mxu0 %v96
    %113 = vmatpush.msra.mxu0 %v39
    %114 = vmatmul.f32.gmra.mxu0 %v83
    %v115 = vpop.f32.mrf.mxu0
    %v116 = vadd.f32 %v77, %v115
    %117 = vmatmul.f32.gmra.mxu0 %v86
    %v118 = vpop.f32.mrf.mxu0
    %v119 = vadd.f32 %v78, %v118
    %120 = vmatmul.f32.gmra.mxu0 %v89
    %v121 = vpop.f32.mrf.mxu0
    %v122 = vadd.f32 %v79, %v121
    %123 = vmatmul.f32.gmra.mxu0 %v92
    %v124 = vpop.f32.mrf.mxu0
    %v125 = vadd.f32 %v80, %v124
    %126 = vdwg.mxu0
    %128 = vset.pattern.permute.xlu0 0
    %129 = vperm.xlu0 %128, %v50
    %v130 = vpop.permute.xlu0 %129
    %133 = vset.pattern.permute.xlu0 0
    %134 = vperm.xlu0 %133, %v51
    %v135 = vpop.permute.xlu0 %134
    %138 = vset.pattern.permute.xlu0 0
    %139 = vperm.xlu0 %138, %v52
    %v140 = vpop.permute.xlu0 %139
    %143 = vset.pattern.permute.xlu0 0
    %144 = vperm.xlu0 %143, %v53
    %v145 = vpop.permute.xlu0 %144
    %v147 = vadd.f32 %v116, %v130
    %v148 = vadd.f32 %v119, %v135
    %v149 = vadd.f32 %v122, %v140
    %v150 = vadd.f32 %v125, %v145
    %v151 = vxor.u32 %v147, 2147483648
    %v152 = vxor.u32 %v148, 2147483648
    %v153 = vxor.u32 %v149, 2147483648
    %v154 = vxor.u32 %v150, 2147483648
    %v155 = vmul.f32 %v151, 1.442695
    %v156 = vpow.pop %v155
    %v157 = vmul.f32 %v152, 1.442695
    %v158 = vpow.pop %v157
    %v159 = vmul.f32 %v153, 1.442695
    %v160 = vpow.pop %v159
    %v161 = vmul.f32 %v154, 1.442695
    %v162 = vpow.pop %v161
    %v163 = vadd.f32 %v156, 1.0
    %v164 = vadd.f32 %v158, 1.0
    %v165 = vadd.f32 %v160, 1.0
    %v166 = vadd.f32 %v162, 1.0
    %v167 = vrcp.pop %v163
    %v168 = vmul.f32 %v163, %v167
    %v169 = vsub.f32 1.0, %v168
    %v170 = vmul.f32 %v167, %v169
    %v171 = vadd.f32 %v167, %v170
    %vm172 = vweird.f32 %v163
    %vm173 = vweird.f32 %v167
    %vm174 = vmor %vm172, %vm173
    %v175 = vsel %vm174, %v167, %v171
    %v176 = vand.u32 2147483647, %v163
    %vm177 = vcmp.eq.f32.partialorder %v176, 8.507059e+37
    %v178 = vand.u32 %v163, 2147483648
    %v179 = vor.u32 1.1754944e-38, %v178
    %v180 = vsel %vm177, %v179, %v175
    %v181 = vmul.f32 1.0, %v180
    %v182 = vrcp.pop %v164
    %v183 = vmul.f32 %v164, %v182
    %v184 = vsub.f32 1.0, %v183
    %v185 = vmul.f32 %v182, %v184
    %v186 = vadd.f32 %v182, %v185
    %vm187 = vweird.f32 %v164
    %vm188 = vweird.f32 %v182
    %vm189 = vmor %vm187, %vm188
    %v190 = vsel %vm189, %v182, %v186
    %v191 = vand.u32 2147483647, %v164
    %vm192 = vcmp.eq.f32.partialorder %v191, 8.507059e+37
    %v193 = vand.u32 %v164, 2147483648
    %v194 = vor.u32 1.1754944e-38, %v193
    %v195 = vsel %vm192, %v194, %v190
    %v196 = vmul.f32 1.0, %v195
    %v197 = vrcp.pop %v165
    %v198 = vmul.f32 %v165, %v197
    %v199 = vsub.f32 1.0, %v198
    %v200 = vmul.f32 %v197, %v199
    %v201 = vadd.f32 %v197, %v200
    %vm202 = vweird.f32 %v165
    %vm203 = vweird.f32 %v197
    %vm204 = vmor %vm202, %vm203
    %v205 = vsel %vm204, %v197, %v201
    %v206 = vand.u32 2147483647, %v165
    %vm207 = vcmp.eq.f32.partialorder %v206, 8.507059e+37
    %v208 = vand.u32 %v165, 2147483648
    %v209 = vor.u32 1.1754944e-38, %v208
    %v210 = vsel %vm207, %v209, %v205
    %v211 = vmul.f32 1.0, %v210
    %v212 = vrcp.pop %v166
    %v213 = vmul.f32 %v166, %v212
    %v214 = vsub.f32 1.0, %v213
    %v215 = vmul.f32 %v212, %v214
    %v216 = vadd.f32 %v212, %v215
    %vm217 = vweird.f32 %v166
    %vm218 = vweird.f32 %v212
    %vm219 = vmor %vm217, %vm218
    %v220 = vsel %vm219, %v212, %v216
    %v221 = vand.u32 2147483647, %v166
    %vm222 = vcmp.eq.f32.partialorder %v221, 8.507059e+37
    %v223 = vand.u32 %v166, 2147483648
    %v224 = vor.u32 1.1754944e-38, %v223
    %v225 = vsel %vm222, %v224, %v220
    %v226 = vmul.f32 1.0, %v225
    %v227 = vmul.f32 %v147, %v181
    %v228 = vmul.f32 %v148, %v196
    %v229 = vmul.f32 %v149, %v211
    %v230 = vmul.f32 %v150, %v226
    %v231 = vld [vmem:[%s5] sm:$0xff]
    %v232 = vld [vmem:[%s5 + $0x8] sm:$0xff]
    %v233 = vld [vmem:[%s5 + $0x10] sm:$0xff]
    %v234 = vld [vmem:[%s5 + $0x18] sm:$0xff]
    %v235 = vld [vmem:[%s6] sm:$0xff]
    %v236 = vld [vmem:[%s6 + $0x8] sm:$0xff]
    %v237 = vld [vmem:[%s6 + $0x10] sm:$0xff]
    %v238 = vld [vmem:[%s6 + $0x18] sm:$0xff]
    %240 = vset.pattern.permute.xlu0 0
    %241 = vperm.xlu0 %240, %v235
    %v242 = vpop.permute.xlu0 %241
    %245 = vset.pattern.permute.xlu0 0
    %246 = vperm.xlu0 %245, %v236
    %v247 = vpop.permute.xlu0 %246
    %250 = vset.pattern.permute.xlu0 0
    %251 = vperm.xlu0 %250, %v237
    %v252 = vpop.permute.xlu0 %251
    %255 = vset.pattern.permute.xlu0 0
    %256 = vperm.xlu0 %255, %v238
    %v257 = vpop.permute.xlu0 %256
    %vm259 = vcmask 261120
    %v261 = vsel %vm259, %v231, 0
    %v264 = vsel %vm259, %v232, 0
    %v267 = vsel %vm259, %v233, 0
    %v270 = vsel %vm259, %v234, 0
    %272 = vmatpush.msra.mxu0 0.0
    %273 = vmatpush.msra.mxu0 0.0
    %274 = vmatpush.msra.mxu0 0.0
    %275 = vmatpush.msra.mxu0 0.0
    %276 = vmatpush.msra.mxu0 0.0
    %277 = vmatpush.msra.mxu0 0.0
    %278 = vmatpush.msra.mxu0 0.0
    %279 = vmatpush.msra.mxu0 0.0
    %280 = vmatpush.msra.mxu0 0.0
    %281 = vmatpush.msra.mxu0 0.0
    %282 = vmatpush.msra.mxu0 0.0
    %283 = vmatpush.msra.mxu0 0.0
    %284 = vmatpush.msra.mxu0 %v230
    %285 = vmatpush.msra.mxu0 %v229
    %286 = vmatpush.msra.mxu0 %v228
    %287 = vmatpush.msra.mxu0 %v227
    %288 = vmatmul.f32.gmra.mxu0 %v261
    %v289 = vpop.f32.mrf.mxu0
    %v290 = vadd.f32 %v242, %v289
    %291 = vmatmul.f32.gmra.mxu0 %v264
    %v292 = vpop.f32.mrf.mxu0
    %v293 = vadd.f32 %v247, %v292
    %294 = vmatmul.f32.gmra.mxu0 %v267
    %v295 = vpop.f32.mrf.mxu0
    %v296 = vadd.f32 %v252, %v295
    %297 = vmatmul.f32.gmra.mxu0 %v270
    %v298 = vpop.f32.mrf.mxu0
    %v299 = vadd.f32 %v257, %v298
    %300 = vdwg.mxu0
    %v301 = vxor.u32 %v290, 2147483648
    %v302 = vxor.u32 %v293, 2147483648
    %v303 = vxor.u32 %v296, 2147483648
    %v304 = vxor.u32 %v299, 2147483648
    %v305 = vmul.f32 %v301, 1.442695
    %v306 = vpow.pop %v305
    %v307 = vmul.f32 %v302, 1.442695
    %v308 = vpow.pop %v307
    %v309 = vmul.f32 %v303, 1.442695
    %v310 = vpow.pop %v309
    %v311 = vmul.f32 %v304, 1.442695
    %v312 = vpow.pop %v311
    %v313 = vadd.f32 %v306, 1.0
    %v314 = vadd.f32 %v308, 1.0
    %v315 = vadd.f32 %v310, 1.0
    %v316 = vadd.f32 %v312, 1.0
    %v317 = vrcp.pop %v313
    %v318 = vmul.f32 %v313, %v317
    %v319 = vsub.f32 1.0, %v318
    %v320 = vmul.f32 %v317, %v319
    %v321 = vadd.f32 %v317, %v320
    %vm322 = vweird.f32 %v313
    %vm323 = vweird.f32 %v317
    %vm324 = vmor %vm322, %vm323
    %v325 = vsel %vm324, %v317, %v321
    %v326 = vand.u32 2147483647, %v313
    %vm327 = vcmp.eq.f32.partialorder %v326, 8.507059e+37
    %v328 = vand.u32 %v313, 2147483648
    %v329 = vor.u32 1.1754944e-38, %v328
    %v330 = vsel %vm327, %v329, %v325
    %v331 = vmul.f32 1.0, %v330
    %v332 = vrcp.pop %v314
    %v333 = vmul.f32 %v314, %v332
    %v334 = vsub.f32 1.0, %v333
    %v335 = vmul.f32 %v332, %v334
    %v336 = vadd.f32 %v332, %v335
    %vm337 = vweird.f32 %v314
    %vm338 = vweird.f32 %v332
    %vm339 = vmor %vm337, %vm338
    %v340 = vsel %vm339, %v332, %v336
    %v341 = vand.u32 2147483647, %v314
    %vm342 = vcmp.eq.f32.partialorder %v341, 8.507059e+37
    %v343 = vand.u32 %v314, 2147483648
    %v344 = vor.u32 1.1754944e-38, %v343
    %v345 = vsel %vm342, %v344, %v340
    %v346 = vmul.f32 1.0, %v345
    %v347 = vrcp.pop %v315
    %v348 = vmul.f32 %v315, %v347
    %v349 = vsub.f32 1.0, %v348
    %v350 = vmul.f32 %v347, %v349
    %v351 = vadd.f32 %v347, %v350
    %vm352 = vweird.f32 %v315
    %vm353 = vweird.f32 %v347
    %vm354 = vmor %vm352, %vm353
    %v355 = vsel %vm354, %v347, %v351
    %v356 = vand.u32 2147483647, %v315
    %vm357 = vcmp.eq.f32.partialorder %v356, 8.507059e+37
    %v358 = vand.u32 %v315, 2147483648
    %v359 = vor.u32 1.1754944e-38, %v358
    %v360 = vsel %vm357, %v359, %v355
    %v361 = vmul.f32 1.0, %v360
    %v362 = vrcp.pop %v316
    %v363 = vmul.f32 %v316, %v362
    %v364 = vsub.f32 1.0, %v363
    %v365 = vmul.f32 %v362, %v364
    %v366 = vadd.f32 %v362, %v365
    %vm367 = vweird.f32 %v316
    %vm368 = vweird.f32 %v362
    %vm369 = vmor %vm367, %vm368
    %v370 = vsel %vm369, %v362, %v366
    %v371 = vand.u32 2147483647, %v316
    %vm372 = vcmp.eq.f32.partialorder %v371, 8.507059e+37
    %v373 = vand.u32 %v316, 2147483648
    %v374 = vor.u32 1.1754944e-38, %v373
    %v375 = vsel %vm372, %v374, %v370
    %v376 = vmul.f32 1.0, %v375
    %v377 = vmul.f32 %v290, %v331
    %v378 = vmul.f32 %v293, %v346
    %v379 = vmul.f32 %v296, %v361
    %v380 = vmul.f32 %v299, %v376
    %v381 = vld [vmem:[%s7] sm:$0xff]
    %v382 = vld [vmem:[%s7 + $0x8] sm:$0xff]
    %v383 = vld [vmem:[%s7 + $0x10] sm:$0xff]
    %v384 = vld [vmem:[%s7 + $0x18] sm:$0xff]
    %v385 = vld [vmem:[%s8] sm:$0xff]
    %v386 = vld [vmem:[%s8 + $0x8] sm:$0xff]
    %v387 = vld [vmem:[%s8 + $0x10] sm:$0xff]
    %v388 = vld [vmem:[%s8 + $0x18] sm:$0xff]
    %390 = vset.pattern.permute.xlu0 0
    %391 = vperm.xlu0 %390, %v385
    %v392 = vpop.permute.xlu0 %391
    %395 = vset.pattern.permute.xlu0 0
    %396 = vperm.xlu0 %395, %v386
    %v397 = vpop.permute.xlu0 %396
    %400 = vset.pattern.permute.xlu0 0
    %401 = vperm.xlu0 %400, %v387
    %v402 = vpop.permute.xlu0 %401
    %405 = vset.pattern.permute.xlu0 0
    %406 = vperm.xlu0 %405, %v388
    %v407 = vpop.permute.xlu0 %406
    %v410 = vsel %vm259, %v381, 0
    %v413 = vsel %vm259, %v382, 0
    %v416 = vsel %vm259, %v383, 0
    %v419 = vsel %vm259, %v384, 0
    %421 = vmatpush.msra.mxu0 0.0
    %422 = vmatpush.msra.mxu0 0.0
    %423 = vmatpush.msra.mxu0 0.0
    %424 = vmatpush.msra.mxu0 0.0
    %425 = vmatpush.msra.mxu0 0.0
    %426 = vmatpush.msra.mxu0 0.0
    %427 = vmatpush.msra.mxu0 0.0
    %428 = vmatpush.msra.mxu0 0.0
    %429 = vmatpush.msra.mxu0 0.0
    %430 = vmatpush.msra.mxu0 0.0
    %431 = vmatpush.msra.mxu0 0.0
    %432 = vmatpush.msra.mxu0 0.0
    %433 = vmatpush.msra.mxu0 %v380
    %434 = vmatpush.msra.mxu0 %v379
    %435 = vmatpush.msra.mxu0 %v378
    %436 = vmatpush.msra.mxu0 %v377
    %437 = vmatmul.f32.gmra.mxu0 %v410
    %v438 = vpop.f32.mrf.mxu0
    %v439 = vadd.f32 %v392, %v438
    %440 = vmatmul.f32.gmra.mxu0 %v413
    %v441 = vpop.f32.mrf.mxu0
    %v442 = vadd.f32 %v397, %v441
    %443 = vmatmul.f32.gmra.mxu0 %v416
    %v444 = vpop.f32.mrf.mxu0
    %v445 = vadd.f32 %v402, %v444
    %446 = vmatmul.f32.gmra.mxu0 %v419
    %v447 = vpop.f32.mrf.mxu0
    %v448 = vadd.f32 %v407, %v447
    %449 = vdwg.mxu0
    %v450 = vxor.u32 %v439, 2147483648
    %v451 = vxor.u32 %v442, 2147483648
    %v452 = vxor.u32 %v445, 2147483648
    %v453 = vxor.u32 %v448, 2147483648
    %v454 = vmul.f32 %v450, 1.442695
    %v455 = vpow.pop %v454
    %v456 = vmul.f32 %v451, 1.442695
    %v457 = vpow.pop %v456
    %v458 = vmul.f32 %v452, 1.442695
    %v459 = vpow.pop %v458
    %v460 = vmul.f32 %v453, 1.442695
    %v461 = vpow.pop %v460
    %v462 = vadd.f32 %v455, 1.0
    %v463 = vadd.f32 %v457, 1.0
    %v464 = vadd.f32 %v459, 1.0
    %v465 = vadd.f32 %v461, 1.0
    %v466 = vrcp.pop %v462
    %v467 = vmul.f32 %v462, %v466
    %v468 = vsub.f32 1.0, %v467
    %v469 = vmul.f32 %v466, %v468
    %v470 = vadd.f32 %v466, %v469
    %vm471 = vweird.f32 %v462
    %vm472 = vweird.f32 %v466
    %vm473 = vmor %vm471, %vm472
    %v474 = vsel %vm473, %v466, %v470
    %v475 = vand.u32 2147483647, %v462
    %vm476 = vcmp.eq.f32.partialorder %v475, 8.507059e+37
    %v477 = vand.u32 %v462, 2147483648
    %v478 = vor.u32 1.1754944e-38, %v477
    %v479 = vsel %vm476, %v478, %v474
    %v480 = vmul.f32 1.0, %v479
    %v481 = vrcp.pop %v463
    %v482 = vmul.f32 %v463, %v481
    %v483 = vsub.f32 1.0, %v482
    %v484 = vmul.f32 %v481, %v483
    %v485 = vadd.f32 %v481, %v484
    %vm486 = vweird.f32 %v463
    %vm487 = vweird.f32 %v481
    %vm488 = vmor %vm486, %vm487
    %v489 = vsel %vm488, %v481, %v485
    %v490 = vand.u32 2147483647, %v463
    %vm491 = vcmp.eq.f32.partialorder %v490, 8.507059e+37
    %v492 = vand.u32 %v463, 2147483648
    %v493 = vor.u32 1.1754944e-38, %v492
    %v494 = vsel %vm491, %v493, %v489
    %v495 = vmul.f32 1.0, %v494
    %v496 = vrcp.pop %v464
    %v497 = vmul.f32 %v464, %v496
    %v498 = vsub.f32 1.0, %v497
    %v499 = vmul.f32 %v496, %v498
    %v500 = vadd.f32 %v496, %v499
    %vm501 = vweird.f32 %v464
    %vm502 = vweird.f32 %v496
    %vm503 = vmor %vm501, %vm502
    %v504 = vsel %vm503, %v496, %v500
    %v505 = vand.u32 2147483647, %v464
    %vm506 = vcmp.eq.f32.partialorder %v505, 8.507059e+37
    %v507 = vand.u32 %v464, 2147483648
    %v508 = vor.u32 1.1754944e-38, %v507
    %v509 = vsel %vm506, %v508, %v504
    %v510 = vmul.f32 1.0, %v509
    %v511 = vrcp.pop %v465
    %v512 = vmul.f32 %v465, %v511
    %v513 = vsub.f32 1.0, %v512
    %v514 = vmul.f32 %v511, %v513
    %v515 = vadd.f32 %v511, %v514
    %vm516 = vweird.f32 %v465
    %vm517 = vweird.f32 %v511
    %vm518 = vmor %vm516, %vm517
    %v519 = vsel %vm518, %v511, %v515
    %v520 = vand.u32 2147483647, %v465
    %vm521 = vcmp.eq.f32.partialorder %v520, 8.507059e+37
    %v522 = vand.u32 %v465, 2147483648
    %v523 = vor.u32 1.1754944e-38, %v522
    %v524 = vsel %vm521, %v523, %v519
    %v525 = vmul.f32 1.0, %v524
    %v526 = vmul.f32 %v439, %v480
    %v527 = vmul.f32 %v442, %v495
    %v528 = vmul.f32 %v445, %v510
    %v529 = vmul.f32 %v448, %v525
    %v530 = vld [vmem:[%s9] sm:$0x7]
    %v531 = vld [vmem:[%s10] sm:$0x7]
    %533 = vset.pattern.permute.xlu0 0
    %534 = vperm.xlu0 %533, %v531
    %v535 = vpop.permute.xlu0 %534
    %v538 = vsel %vm259, %v530, 0
    %540 = vmatpush.msra.mxu0 0.0
    %541 = vmatpush.msra.mxu0 0.0
    %542 = vmatpush.msra.mxu0 0.0
    %543 = vmatpush.msra.mxu0 0.0
    %544 = vmatpush.msra.mxu0 0.0
    %545 = vmatpush.msra.mxu0 0.0
    %546 = vmatpush.msra.mxu0 0.0
    %547 = vmatpush.msra.mxu0 0.0
    %548 = vmatpush.msra.mxu0 0.0
    %549 = vmatpush.msra.mxu0 0.0
    %550 = vmatpush.msra.mxu0 0.0
    %551 = vmatpush.msra.mxu0 0.0
    %552 = vmatpush.msra.mxu0 %v529
    %553 = vmatpush.msra.mxu0 %v528
    %554 = vmatpush.msra.mxu0 %v527
    %555 = vmatpush.msra.mxu0 %v526
    %556 = vmatmul.f32.gmra.mxu0 %v538
    %v557 = vpop.f32.mrf.mxu0
    %v558 = vadd.f32 %v535, %v557
    %559 = vdwg.mxu0
    %560 = vst [vmem:[#allocation2] sm:$0x7] %v558
    // Predicated region
    $region46: #{sb_lie_flow_forward.1} parent=1 // pred_check
      _
    $region47: #{sb_lie_flow_forward.1} parent=1 // pred_check_branch
      %562 = sbr.rel (0) target = $region49
    $region48: #{sb_lie_flow_forward.1} parent=1 // pred_region
      %564 = vsyncadd [#allocation3], 0
      %s566 = sshll.u32 [#allocation2], 4
      %s567 = int_to_ptr.vmem [resolvable:$true] %s566
      %s568 = sshll.u32 %s11, 4
      %s569 = int_to_ptr.hbm [resolvable:$true] %s568
      %571 = dma.vmem_to_hbm [thread:$0]  %s567, 64, %s569, [#allocation3]
    $region49: #{sb_lie_flow_forward.1} parent=1 // pred_fallthru
      _
    // Predicated region
    $region50: #{sb_lie_flow_forward.1} parent=1 // pred_check
      _
    $region51: #{sb_lie_flow_forward.1} parent=1 // pred_check_branch
      %573 = sbr.rel (0) target = $region53
    $region52: #{sb_lie_flow_forward.1} parent=1 // pred_region
      %575 = dma.done [#allocation3], 64
    $region53: #{sb_lie_flow_forward.1} parent=1 // pred_fallthru
      _
    %576 = vsyncpa [#allocation3], 1

</llo_original>
